<compile_context>
chip_gen: v7x
topology: tpu7x:2x2x1
jax: 0.10.0
libtpu: 0.0.40
codegen_flags: <defaults>
</compile_context>

<pallas_src>
import math

import jax
import jax.numpy as jnp
from jax import lax
from jax.experimental import pallas as pl
from jax.experimental.pallas import tpu as pltpu

_LANE = 128
_MAX_PACKED_LANES = 512                 # cap on packed lane width (keeps selector tiny)
_TARGET_X_BLOCK_BYTES = 8 * 1024 * 1024 # ~8 MiB of x per block, double-buffered
_MIN_GRID_BLOCKS = 4                    # aim for >=4 blocks (v7x megacore + pipelining)
_VMEM_LIMIT_BYTES = 48 * 1024 * 1024    # < 64 MiB/TC on v7x; plenty on v5e/v6e


def _round_up(a: int, b: int) -> int:
    return ((a + b - 1) // b) * b


def _projection_kernel(x_ref, u_hi_ref, u_lo_ref, o_ref):
    # x_ref:         (TR, L)  packed input rows (L = P*D lanes)
    # u_hi/u_lo_ref: (L, P)   bf16 hi/lo split of block-diag selector u[q*D+j, q] = unit[j]
    # o_ref:         (TR, P)  o[r, q] = y[r*P + q]
    #
    # x streams as the MXU LHS (one push per vreg per pass); the tiny selector is the
    # latched RHS.  For f32 inputs a manual 3-pass bf16 split keeps f32-like accuracy
    # at half the MXU passes of Precision.HIGHEST; the split itself is cheap VPU work
    # hidden under the HBM DMA.
    dims = (((1,), (0,)), ((), ()))
    x = x_ref[...]
    u_hi = u_hi_ref[...]
    if x.dtype == jnp.float32:
        x_hi = x.astype(jnp.bfloat16)
        x_lo = (x - x_hi.astype(jnp.float32)).astype(jnp.bfloat16)
        acc = lax.dot_general(x_hi, u_hi, dims, preferred_element_type=jnp.float32)
        acc = acc + lax.dot_general(x_lo, u_hi, dims, preferred_element_type=jnp.float32)
        acc = acc + lax.dot_general(x_hi, u_lo_ref[...], dims,
                                    preferred_element_type=jnp.float32)
    else:
        # Narrow inputs (e.g. bf16) are already single-pass at full input precision.
        acc = lax.dot_general(x, u_hi.astype(x.dtype), dims,
                              preferred_element_type=jnp.float32)
    o_ref[...] = acc.astype(o_ref.dtype)


def _projection_forward(x: jax.Array, unit_f32: jax.Array) -> jax.Array:
    n, d = x.shape
    dtype = x.dtype
    itemsize = jnp.dtype(dtype).itemsize

    # --- lane packing (free, contiguous metadata reshape; no HBM copy) ------------
    p = 1
    if d < _LANE:
        l_cand = math.lcm(d, _LANE)
        p_cand = l_cand // d
        if l_cand <= _MAX_PACKED_LANES and n % p_cand == 0:
            p = p_cand
    l = p * d
    packed_rows = n // p                     # == n when p == 1
    x_in = x.reshape(packed_rows, l) if p > 1 else x

    # Block-diagonal selector (L, P): sel[q*d + j, q] = unit[j]; split into bf16
    # hi/lo halves so the kernel's 3-pass contraction stays f32-accurate.
    # (For a fixed projection vector these tiny ops can be hoisted out of the
    # per-call path by the caller.)
    sel = jnp.kron(jnp.eye(p, dtype=jnp.float32), unit_f32[:, None])   # (l, p)
    u_hi = sel.astype(jnp.bfloat16)
    u_lo = (sel - u_hi.astype(jnp.float32)).astype(jnp.bfloat16)

    # --- row-tile sizing ------------------------------------------------------------
    lane_pad = _round_up(l, _LANE)           # VMEM lane footprint of one row
    row_bytes = lane_pad * itemsize
    rows_fit = _TARGET_X_BLOCK_BYTES // max(row_bytes, 1)
    # tr is normally a multiple of 128 (satisfies sublane tiling for every dtype);
    # fall back to the dtype-minimal sublane multiple only for enormous D.
    tr_unit = _LANE if rows_fit >= _LANE else max(8, 32 // itemsize)
    tr_max = max(tr_unit, (rows_fit // tr_unit) * tr_unit)
    # Keep >= _MIN_GRID_BLOCKS blocks when the data allows it (v7x's two TensorCores
    # both get work and the x input stays double-buffered).
    tr_balanced = _round_up(pl.cdiv(packed_rows, _MIN_GRID_BLOCKS), tr_unit)
    tr = max(tr_unit, min(tr_max, tr_balanced))
    grid = (pl.cdiv(packed_rows, tr),)       # partial final tile; no padding copy of x

    out = pl.pallas_call(
        _projection_kernel,
        out_shape=jax.ShapeDtypeStruct((packed_rows, p), dtype),
        grid_spec=pltpu.PrefetchScalarGridSpec(
            num_scalar_prefetch=0,
            grid=grid,
            in_specs=[
                pl.BlockSpec((tr, l), lambda i: (i, 0)),   # big lane-dense x row tile
                pl.BlockSpec((l, p), lambda i: (0, 0)),    # tiny shared selector (hi)
                pl.BlockSpec((l, p), lambda i: (0, 0)),    # tiny shared selector (lo)
            ],
            out_specs=pl.BlockSpec((tr, p), lambda i: (i, 0)),
        ),
        compiler_params=pltpu.CompilerParams(
            dimension_semantics=("parallel",),             # shard blocks over v7x's 2 TCs
            vmem_limit_bytes=_VMEM_LIMIT_BYTES,
        ),
        cost_estimate=pl.CostEstimate(
            flops=2 * n * d * (3 if dtype == jnp.float32 else 1),
            transcendentals=0,
            bytes_accessed=n * d * itemsize + n * itemsize + 2 * l * p * 2,
        ),
    )(x_in, u_hi, u_lo)

    # out[r, q] = y[r*p + q]; a free row-major reshape recovers y in order.
    return out.reshape(n, 1)


def projection_transform_1d(x: jax.Array, vector: jax.Array) -> jax.Array:
    """Pallas equivalent of ProjectionTransform1D.forward (vector normalized as in __init__)."""
    unit = vector.astype(jnp.float32)
    unit = unit / jnp.linalg.norm(unit)
    return _projection_forward(x, unit)


if __name__ == "__main__":
    key = jax.random.PRNGKey(0)
    keys = jax.random.split(key, 10)

    def _check(n, d, kx, kv):
        x = jax.random.normal(kx, (n, d), dtype=jnp.float32)
        vector = jax.random.normal(kv, (d,), dtype=jnp.float32)
        y = jax.block_until_ready(projection_transform_1d(x, vector))
        unit = vector / jnp.linalg.norm(vector)
        y_ref = jnp.sum(x * unit, axis=1, keepdims=True)
        assert y.shape == (n, 1), (y.shape, n)
        assert jnp.allclose(y, y_ref, atol=1e-4, rtol=1e-4), (
            n, d, float(jnp.max(jnp.abs(y - y_ref))))

    _check(16, 32, keys[0], keys[1])     # packed (p=4), single partial block
    _check(13, 256, keys[2], keys[3])    # D >= 128, ragged N, partial edge block
    _check(1000, 32, keys[4], keys[5])   # packed (p=4), multi-block grid + partial tail
    _check(32, 24, keys[6], keys[7])     # lcm packing (p=16, L=384)
    _check(10, 24, keys[8], keys[9])     # N % p != 0 -> unpacked fallback, D < 128

    print("KERNEL_OK")
</pallas_src>

<mosaic_0001>
module attributes {stable_mosaic.version = 11 : i64} {
  func.func @_projection_kernel(%arg0: i32, %arg1: memref<128x128xf32, #tpu.memory_space<vmem>>, %arg2: memref<128x4xbf16, #tpu.memory_space<vmem>>, %arg3: memref<128x4xbf16, #tpu.memory_space<vmem>>, %arg4: memref<128x4xf32, #tpu.memory_space<vmem>>) attributes {dimension_semantics = [#tpu.dimension_semantics<parallel>], iteration_bounds = array<i64: 1>, scalar_prefetch = 0 : i64, scratch_operands = 0 : i64, tpu.core_type = #tpu.core_type<tc>, window_params = [{transform_indices = @transform_0, window_bounds = array<i64: 128, 128>}, {pipeline_mode = #tpu.pipeline_mode<synchronous>, transform_indices = @transform_1, window_bounds = array<i64: 128, 4>}, {pipeline_mode = #tpu.pipeline_mode<synchronous>, transform_indices = @transform_2, window_bounds = array<i64: 128, 4>}, {transform_indices = @transform_3, window_bounds = array<i64: 128, 4>}]} {
    %c0 = arith.constant 0 : index
    %c0_0 = arith.constant 0 : index
    %0 = vector.load %arg1[%c0, %c0_0] : memref<128x128xf32, #tpu.memory_space<vmem>>, vector<128x128xf32>
    %c0_1 = arith.constant 0 : index
    %c0_2 = arith.constant 0 : index
    %1 = vector.load %arg2[%c0_1, %c0_2] : memref<128x4xbf16, #tpu.memory_space<vmem>>, vector<128x4xbf16>
    %2 = arith.truncf %0 : vector<128x128xf32> to vector<128x128xbf16>
    %3 = arith.extf %2 : vector<128x128xbf16> to vector<128x128xf32>
    %4 = arith.subf %0, %3 : vector<128x128xf32>
    %5 = arith.truncf %4 : vector<128x128xf32> to vector<128x128xbf16>
    %cst = arith.constant dense<0.000000e+00> : vector<128x4xf32>
    %6 = tpu.matmul %2, %1, %cst {dimension_numbers = #tpu.dot_dimension_numbers<[1], [0], [0], [1], [0, 0, 1, 1], [], []>} : vector<128x128xbf16>, vector<128x4xbf16>, vector<128x4xf32> -> vector<128x4xf32>
    %cst_3 = arith.constant dense<0.000000e+00> : vector<128x4xf32>
    %7 = tpu.matmul %5, %1, %cst_3 {dimension_numbers = #tpu.dot_dimension_numbers<[1], [0], [0], [1], [0, 0, 1, 1], [], []>} : vector<128x128xbf16>, vector<128x4xbf16>, vector<128x4xf32> -> vector<128x4xf32>
    %8 = arith.addf %6, %7 : vector<128x4xf32>
    %c0_4 = arith.constant 0 : index
    %c0_5 = arith.constant 0 : index
    %9 = vector.load %arg3[%c0_4, %c0_5] : memref<128x4xbf16, #tpu.memory_space<vmem>>, vector<128x4xbf16>
    %cst_6 = arith.constant dense<0.000000e+00> : vector<128x4xf32>
    %10 = tpu.matmul %2, %9, %cst_6 {dimension_numbers = #tpu.dot_dimension_numbers<[1], [0], [0], [1], [0, 0, 1, 1], [], []>} : vector<128x128xbf16>, vector<128x4xbf16>, vector<128x4xf32> -> vector<128x4xf32>
    %11 = arith.addf %8, %10 : vector<128x4xf32>
    %c0_7 = arith.constant 0 : index
    %c0_8 = arith.constant 0 : index
    %12 = vector.load %arg4[%c0_7, %c0_8] : memref<128x4xf32, #tpu.memory_space<vmem>>, vector<128x4xf32>
    tpu.vector_store %arg4[%c0_7, %c0_8], %11 {strides = array<i32>} : memref<128x4xf32, #tpu.memory_space<vmem>>, vector<128x4xf32>,
    return
  }
  func.func @transform_0(%arg0: i32) -> (i32, i32) {
    %c0_i32 = arith.constant 0 : i32
    %c0_i32_0 = arith.constant 0 : i32
    return %arg0, %c0_i32 : i32, i32
  }
  func.func @transform_1(%arg0: i32) -> (i32, i32) {
    %c0_i32 = arith.constant 0 : i32
    %c0_i32_0 = arith.constant 0 : i32
    %c0_i32_1 = arith.constant 0 : i32
    return %c0_i32, %c0_i32_0 : i32, i32
  }
  func.func @transform_2(%arg0: i32) -> (i32, i32) {
    %c0_i32 = arith.constant 0 : i32
    %c0_i32_0 = arith.constant 0 : i32
    %c0_i32_1 = arith.constant 0 : i32
    return %c0_i32, %c0_i32_0 : i32, i32
  }
  func.func @transform_3(%arg0: i32) -> (i32, i32) {
    %c0_i32 = arith.constant 0 : i32
    %c0_i32_0 = arith.constant 0 : i32
    return %arg0, %c0_i32 : i32, i32
  }
}

</mosaic_0001>

<llo_original>
// kernel: tpu_custom_call.1
$region0: #{tpu_custom_call.1}
  #allocation0 [shape = 'u32[]', space=smem, size = 0x4, offset = 0x4, fixed_abs, tag = 'smem constant byte address 0x4 - core index']
  #allocation1 [shape = 'u32[144,128]{1,0:T(1,128)}', space=vmem, size = 0x12000, scoped, tag = 'internal scratch']
  %s0 = inlined_call_operand.vmem [shape: f32[4,128], index: 0, kind: input, shape index: {}]
  %s1 = inlined_call_operand.vmem [shape: bf16[128,4], index: 1, kind: input, shape index: {}]
  %s2 = inlined_call_operand.vmem [shape: bf16[128,4], index: 2, kind: input, shape index: {}]
  %s3 = inlined_call_operand.hbm [shape: f32[4,4], index: 3, kind: output, shape index: {}]
  %s4 = sld [smem:[#allocation0]]
  $region22: #{tpu_custom_call.1} parent=0
    _
  %s6 = ssub.s32 1, %s4
  %s7 = scalar_select 0, %s6, %s4
  $region1: #{tpu_custom_call.1} parent=0
    #allocation2 [shape = 'u8[65536]{0}', space=vmem, size = 0x10000, scoped, tag = 'output window, operand 0, single buffered']
    #allocation3 [shape = 's32[1]{0}', space=sflag, size = 0x4, scoped, tag = 'scoped memory for tpu_custom_call.1']
    %8 = vsyncpa [#allocation3], 0
    // Predicated region
    $region2: #{tpu_custom_call.1} parent=1 // pred_check
      _
    $region3: #{tpu_custom_call.1} parent=1 // pred_check_branch
      %10 = sbr.rel (0) target = $region5
    $region4: #{tpu_custom_call.1} parent=1 // pred_region
      _
    $region5: #{tpu_custom_call.1} parent=1 // pred_fallthru
      _
    // Predicated region
    $region6: #{tpu_custom_call.1} parent=1 // pred_check
      _
    $region7: #{tpu_custom_call.1} parent=1 // pred_check_branch
      %12 = sbr.rel (0) target = $region9
    $region8: #{tpu_custom_call.1} parent=1 // pred_region
      _
    $region9: #{tpu_custom_call.1} parent=1 // pred_fallthru
      _
    // Predicated region
    $region10: #{tpu_custom_call.1} parent=1 // pred_check
      _
    $region11: #{tpu_custom_call.1} parent=1 // pred_check_branch
      %14 = sbr.rel (0) target = $region13
    $region12: #{tpu_custom_call.1} parent=1 // pred_region
      _
    $region13: #{tpu_custom_call.1} parent=1 // pred_fallthru
      _
    %v16 = vld [vmem:[%s0] sm:$0xff]
    %v17 = vld [vmem:[%s0 + $0x8] sm:$0xff]
    %v18 = vld [vmem:[%s0 + $0x10] sm:$0xff]
    %v19 = vld [vmem:[%s0 + $0x18] sm:$0xff]
    %v20 = vld [vmem:[%s0 + $0x20] sm:$0xff]
    %v21 = vld [vmem:[%s0 + $0x28] sm:$0xff]
    %v22 = vld [vmem:[%s0 + $0x30] sm:$0xff]
    %v23 = vld [vmem:[%s0 + $0x38] sm:$0xff]
    %v24 = vld [vmem:[%s0 + $0x40] sm:$0xff]
    %v25 = vld [vmem:[%s0 + $0x48] sm:$0xff]
    %v26 = vld [vmem:[%s0 + $0x50] sm:$0xff]
    %v27 = vld [vmem:[%s0 + $0x58] sm:$0xff]
    %v28 = vld [vmem:[%s0 + $0x60] sm:$0xff]
    %v29 = vld [vmem:[%s0 + $0x68] sm:$0xff]
    %v30 = vld [vmem:[%s0 + $0x70] sm:$0xff]
    %v31 = vld [vmem:[%s0 + $0x78] sm:$0xff]
    %v32 = vld [vmem:[%s1] sm:$0xf]
    %v33 = vld [vmem:[%s1 + $0x4] sm:$0xf]
    %v34 = vld [vmem:[%s1 + $0x8] sm:$0xf]
    %v35 = vld [vmem:[%s1 + $0xc] sm:$0xf]
    %v36 = vld [vmem:[%s1 + $0x10] sm:$0xf]
    %v37 = vld [vmem:[%s1 + $0x14] sm:$0xf]
    %v38 = vld [vmem:[%s1 + $0x18] sm:$0xf]
    %v39 = vld [vmem:[%s1 + $0x1c] sm:$0xf]
    %v40 = vld [vmem:[%s1 + $0x20] sm:$0xf]
    %v41 = vld [vmem:[%s1 + $0x24] sm:$0xf]
    %v42 = vld [vmem:[%s1 + $0x28] sm:$0xf]
    %v43 = vld [vmem:[%s1 + $0x2c] sm:$0xf]
    %v44 = vld [vmem:[%s1 + $0x30] sm:$0xf]
    %v45 = vld [vmem:[%s1 + $0x34] sm:$0xf]
    %v46 = vld [vmem:[%s1 + $0x38] sm:$0xf]
    %v47 = vld [vmem:[%s1 + $0x3c] sm:$0xf]
    %v48 = vpack.c.bf16 %v17, %v16
    %v49 = vpack.c.bf16 %v19, %v18
    %v50 = vpack.c.bf16 %v21, %v20
    %v51 = vpack.c.bf16 %v23, %v22
    %v52 = vpack.c.bf16 %v25, %v24
    %v53 = vpack.c.bf16 %v27, %v26
    %v54 = vpack.c.bf16 %v29, %v28
    %v55 = vpack.c.bf16 %v31, %v30
    %v56 = vunpack.c.l.bf16 %v48
    %v57 = vunpack.c.h.bf16 %v48
    %v58 = vunpack.c.l.bf16 %v49
    %v59 = vunpack.c.h.bf16 %v49
    %v60 = vunpack.c.l.bf16 %v50
    %v61 = vunpack.c.h.bf16 %v50
    %v62 = vunpack.c.l.bf16 %v51
    %v63 = vunpack.c.h.bf16 %v51
    %v64 = vunpack.c.l.bf16 %v52
    %v65 = vunpack.c.h.bf16 %v52
    %v66 = vunpack.c.l.bf16 %v53
    %v67 = vunpack.c.h.bf16 %v53
    %v68 = vunpack.c.l.bf16 %v54
    %v69 = vunpack.c.h.bf16 %v54
    %v70 = vunpack.c.l.bf16 %v55
    %v71 = vunpack.c.h.bf16 %v55
    %v72 = vsub.f32 %v16, %v56
    %v73 = vsub.f32 %v17, %v57
    %v74 = vsub.f32 %v18, %v58
    %v75 = vsub.f32 %v19, %v59
    %v76 = vsub.f32 %v20, %v60
    %v77 = vsub.f32 %v21, %v61
    %v78 = vsub.f32 %v22, %v62
    %v79 = vsub.f32 %v23, %v63
    %v80 = vsub.f32 %v24, %v64
    %v81 = vsub.f32 %v25, %v65
    %v82 = vsub.f32 %v26, %v66
    %v83 = vsub.f32 %v27, %v67
    %v84 = vsub.f32 %v28, %v68
    %v85 = vsub.f32 %v29, %v69
    %v86 = vsub.f32 %v30, %v70
    %v87 = vsub.f32 %v31, %v71
    %v88 = vpack.c.bf16 %v73, %v72
    %v89 = vpack.c.bf16 %v75, %v74
    %v90 = vpack.c.bf16 %v77, %v76
    %v91 = vpack.c.bf16 %v79, %v78
    %v92 = vpack.c.bf16 %v81, %v80
    %v93 = vpack.c.bf16 %v83, %v82
    %v94 = vpack.c.bf16 %v85, %v84
    %v95 = vpack.c.bf16 %v87, %v86
    %v112 = vunpack.c.l.b16 %v32
    %v113 = vunpack.c.l.b16 %v33
    %v114 = vunpack.c.l.b16 %v34
    %v115 = vunpack.c.l.b16 %v35
    %v116 = vunpack.c.l.b16 %v36
    %v117 = vunpack.c.l.b16 %v37
    %v118 = vunpack.c.l.b16 %v38
    %v119 = vunpack.c.l.b16 %v39
    %v120 = vunpack.c.l.b16 %v40
    %v121 = vunpack.c.l.b16 %v41
    %v122 = vunpack.c.l.b16 %v42
    %v123 = vunpack.c.l.b16 %v43
    %v124 = vunpack.c.l.b16 %v44
    %v125 = vunpack.c.l.b16 %v45
    %v126 = vunpack.c.l.b16 %v46
    %v127 = vunpack.c.l.b16 %v47
    %v128 = vpack.c.b16 %v113, %v112
    %v129 = vpack.c.b16 %v115, %v114
    %v130 = vpack.c.b16 %v117, %v116
    %v131 = vpack.c.b16 %v119, %v118
    %v132 = vpack.c.b16 %v121, %v120
    %v133 = vpack.c.b16 %v123, %v122
    %v134 = vpack.c.b16 %v125, %v124
    %v135 = vpack.c.b16 %v127, %v126
    %144 = vmatprep.subr.bf16.mxu0 0
    %145 = vmatpush1.bf16.msra.mxu0 %v128
    %146 = vmatprep.subr.bf16.mxu0 0
    %147 = vmatpush1.bf16.msra.mxu0 %v129
    %148 = vmatprep.subr.bf16.mxu0 0
    %149 = vmatpush1.bf16.msra.mxu0 %v130
    %150 = vmatprep.subr.bf16.mxu0 0
    %151 = vmatpush1.bf16.msra.mxu0 %v131
    %152 = vmatprep.subr.bf16.mxu0 0
    %153 = vmatpush1.bf16.msra.mxu0 %v132
    %154 = vmatprep.subr.bf16.mxu0 0
    %155 = vmatpush1.bf16.msra.mxu0 %v133
    %156 = vmatprep.subr.bf16.mxu0 0
    %157 = vmatpush1.bf16.msra.mxu0 %v134
    %158 = vmatprep.subr.bf16.mxu0 0
    %159 = vmatpush1.bf16.msra.mxu0 %v135
    %160 = vmatprep.subr.bf16.mxu0 0
    %161 = vmatpush1.bf16.msra.mxu0 0
    %162 = vmatprep.subr.bf16.mxu0 0
    %163 = vmatpush1.bf16.msra.mxu0 0
    %164 = vmatprep.subr.bf16.mxu0 0
    %165 = vmatpush1.bf16.msra.mxu0 0
    %166 = vmatprep.subr.bf16.mxu0 0
    %167 = vmatpush1.bf16.msra.mxu0 0
    %168 = vmatprep.subr.bf16.mxu0 0
    %169 = vmatpush1.bf16.msra.mxu0 0
    %170 = vmatprep.subr.bf16.mxu0 0
    %171 = vmatpush1.bf16.msra.mxu0 0
    %172 = vmatprep.subr.bf16.mxu0 0
    %173 = vmatpush1.bf16.msra.mxu0 0
    %174 = vmatprep.subr.bf16.mxu0 0
    %175 = vmatpush1.bf16.msra.mxu0 0
    %176 = vmatprep.mubr.bf16.mxu0 0
    %177 = vmatmul.mubr.bf16.gmra.mrb[0].mxu0 %v88
    %v178 = vpop.f32.mrb[0].mxu0
    %v179 = vadd.f32 0.0, %v178
    %v180 = vpop.f32.mrb[0].mxu0
    %v181 = vpop.f32.mrb[0].mxu0
    %v182 = vadd.f32 0.0, %v181
    %v183 = vpop.f32.mrb[0].mxu0
    %184 = vmatprep.mubr.bf16.mxu0 0
    %185 = vmatmul.mubr.bf16.gmra.mrb[0].mxu0 %v89
    %v186 = vpop.f32.mrb[0].mxu0
    %v187 = vadd.f32 0.0, %v186
    %v188 = vpop.f32.mrb[0].mxu0
    %v189 = vpop.f32.mrb[0].mxu0
    %v190 = vadd.f32 0.0, %v189
    %v191 = vpop.f32.mrb[0].mxu0
    %192 = vmatprep.mubr.bf16.mxu0 0
    %193 = vmatmul.mubr.bf16.gmra.mrb[0].mxu0 %v90
    %v194 = vpop.f32.mrb[0].mxu0
    %v195 = vadd.f32 0.0, %v194
    %v196 = vpop.f32.mrb[0].mxu0
    %v197 = vpop.f32.mrb[0].mxu0
    %v198 = vadd.f32 0.0, %v197
    %v199 = vpop.f32.mrb[0].mxu0
    %200 = vmatprep.mubr.bf16.mxu0 0
    %201 = vmatmul.mubr.bf16.gmra.mrb[0].mxu0 %v91
    %v202 = vpop.f32.mrb[0].mxu0
    %v203 = vadd.f32 0.0, %v202
    %v204 = vpop.f32.mrb[0].mxu0
    %v205 = vpop.f32.mrb[0].mxu0
    %v206 = vadd.f32 0.0, %v205
    %v207 = vpop.f32.mrb[0].mxu0
    %208 = vmatprep.mubr.bf16.mxu0 0
    %209 = vmatmul.mubr.bf16.gmra.mrb[0].mxu0 %v92
    %v210 = vpop.f32.mrb[0].mxu0
    %v211 = vadd.f32 0.0, %v210
    %v212 = vpop.f32.mrb[0].mxu0
    %v213 = vpop.f32.mrb[0].mxu0
    %v214 = vadd.f32 0.0, %v213
    %v215 = vpop.f32.mrb[0].mxu0
    %216 = vmatprep.mubr.bf16.mxu0 0
    %217 = vmatmul.mubr.bf16.gmra.mrb[0].mxu0 %v93
    %v218 = vpop.f32.mrb[0].mxu0
    %v219 = vadd.f32 0.0, %v218
    %v220 = vpop.f32.mrb[0].mxu0
    %v221 = vpop.f32.mrb[0].mxu0
    %v222 = vadd.f32 0.0, %v221
    %v223 = vpop.f32.mrb[0].mxu0
    %224 = vmatprep.mubr.bf16.mxu0 0
    %225 = vmatmul.mubr.bf16.gmra.mrb[0].mxu0 %v94
    %v226 = vpop.f32.mrb[0].mxu0
    %v227 = vadd.f32 0.0, %v226
    %v228 = vpop.f32.mrb[0].mxu0
    %v229 = vpop.f32.mrb[0].mxu0
    %v230 = vadd.f32 0.0, %v229
    %v231 = vpop.f32.mrb[0].mxu0
    %232 = vmatprep.mubr.bf16.mxu0 0
    %233 = vmatmul.mubr.bf16.gmra.mrb[0].mxu0 %v95
    %v234 = vpop.f32.mrb[0].mxu0
    %v235 = vadd.f32 0.0, %v234
    %v236 = vpop.f32.mrb[0].mxu0
    %v237 = vpop.f32.mrb[0].mxu0
    %v238 = vadd.f32 0.0, %v237
    %v239 = vpop.f32.mrb[0].mxu0
    %240 = vdwg.mxu0
    %241 = vmatprep.subr.bf16.mxu0 0
    %242 = vmatpush1.bf16.msra.mxu0 %v128
    %243 = vmatprep.subr.bf16.mxu0 0
    %244 = vmatpush1.bf16.msra.mxu0 %v129
    %245 = vmatprep.subr.bf16.mxu0 0
    %246 = vmatpush1.bf16.msra.mxu0 %v130
    %247 = vmatprep.subr.bf16.mxu0 0
    %248 = vmatpush1.bf16.msra.mxu0 %v131
    %249 = vmatprep.subr.bf16.mxu0 0
    %250 = vmatpush1.bf16.msra.mxu0 %v132
    %251 = vmatprep.subr.bf16.mxu0 0
    %252 = vmatpush1.bf16.msra.mxu0 %v133
    %253 = vmatprep.subr.bf16.mxu0 0
    %254 = vmatpush1.bf16.msra.mxu0 %v134
    %255 = vmatprep.subr.bf16.mxu0 0
    %256 = vmatpush1.bf16.msra.mxu0 %v135
    %257 = vmatprep.subr.bf16.mxu0 0
    %258 = vmatpush1.bf16.msra.mxu0 0
    %259 = vmatprep.subr.bf16.mxu0 0
    %260 = vmatpush1.bf16.msra.mxu0 0
    %261 = vmatprep.subr.bf16.mxu0 0
    %262 = vmatpush1.bf16.msra.mxu0 0
    %263 = vmatprep.subr.bf16.mxu0 0
    %264 = vmatpush1.bf16.msra.mxu0 0
    %265 = vmatprep.subr.bf16.mxu0 0
    %266 = vmatpush1.bf16.msra.mxu0 0
    %267 = vmatprep.subr.bf16.mxu0 0
    %268 = vmatpush1.bf16.msra.mxu0 0
    %269 = vmatprep.subr.bf16.mxu0 0
    %270 = vmatpush1.bf16.msra.mxu0 0
    %271 = vmatprep.subr.bf16.mxu0 0
    %272 = vmatpush1.bf16.msra.mxu0 0
    %273 = vmatprep.mubr.bf16.mxu0 0
    %274 = vmatmul.mubr.bf16.gmra.mrb[0].mxu0 %v48
    %v275 = vpop.f32.mrb[0].mxu0
    %v276 = vadd.f32 %v179, %v275
    %v277 = vpop.f32.mrb[0].mxu0
    %v278 = vpop.f32.mrb[0].mxu0
    %v279 = vadd.f32 %v182, %v278
    %v280 = vpop.f32.mrb[0].mxu0
    %281 = vmatprep.mubr.bf16.mxu0 0
    %282 = vmatmul.mubr.bf16.gmra.mrb[0].mxu0 %v49
    %v283 = vpop.f32.mrb[0].mxu0
    %v284 = vadd.f32 %v187, %v283
    %v285 = vpop.f32.mrb[0].mxu0
    %v286 = vpop.f32.mrb[0].mxu0
    %v287 = vadd.f32 %v190, %v286
    %v288 = vpop.f32.mrb[0].mxu0
    %289 = vmatprep.mubr.bf16.mxu0 0
    %290 = vmatmul.mubr.bf16.gmra.mrb[0].mxu0 %v50
    %v291 = vpop.f32.mrb[0].mxu0
    %v292 = vadd.f32 %v195, %v291
    %v293 = vpop.f32.mrb[0].mxu0
    %v294 = vpop.f32.mrb[0].mxu0
    %v295 = vadd.f32 %v198, %v294
    %v296 = vpop.f32.mrb[0].mxu0
    %297 = vmatprep.mubr.bf16.mxu0 0
    %298 = vmatmul.mubr.bf16.gmra.mrb[0].mxu0 %v51
    %v299 = vpop.f32.mrb[0].mxu0
    %v300 = vadd.f32 %v203, %v299
    %v301 = vpop.f32.mrb[0].mxu0
    %v302 = vpop.f32.mrb[0].mxu0
    %v303 = vadd.f32 %v206, %v302
    %v304 = vpop.f32.mrb[0].mxu0
    %305 = vmatprep.mubr.bf16.mxu0 0
    %306 = vmatmul.mubr.bf16.gmra.mrb[0].mxu0 %v52
    %v307 = vpop.f32.mrb[0].mxu0
    %v308 = vadd.f32 %v211, %v307
    %v309 = vpop.f32.mrb[0].mxu0
    %v310 = vpop.f32.mrb[0].mxu0
    %v311 = vadd.f32 %v214, %v310
    %v312 = vpop.f32.mrb[0].mxu0
    %313 = vmatprep.mubr.bf16.mxu0 0
    %314 = vmatmul.mubr.bf16.gmra.mrb[0].mxu0 %v53
    %v315 = vpop.f32.mrb[0].mxu0
    %v316 = vadd.f32 %v219, %v315
    %v317 = vpop.f32.mrb[0].mxu0
    %v318 = vpop.f32.mrb[0].mxu0
    %v319 = vadd.f32 %v222, %v318
    %v320 = vpop.f32.mrb[0].mxu0
    %321 = vmatprep.mubr.bf16.mxu0 0
    %322 = vmatmul.mubr.bf16.gmra.mrb[0].mxu0 %v54
    %v323 = vpop.f32.mrb[0].mxu0
    %v324 = vadd.f32 %v227, %v323
    %v325 = vpop.f32.mrb[0].mxu0
    %v326 = vpop.f32.mrb[0].mxu0
    %v327 = vadd.f32 %v230, %v326
    %v328 = vpop.f32.mrb[0].mxu0
    %329 = vmatprep.mubr.bf16.mxu0 0
    %330 = vmatmul.mubr.bf16.gmra.mrb[0].mxu0 %v55
    %v331 = vpop.f32.mrb[0].mxu0
    %v332 = vadd.f32 %v235, %v331
    %v333 = vpop.f32.mrb[0].mxu0
    %v334 = vpop.f32.mrb[0].mxu0
    %v335 = vadd.f32 %v238, %v334
    %v336 = vpop.f32.mrb[0].mxu0
    %337 = vdwg.mxu0
    %v338 = vld [vmem:[%s2] sm:$0xf]
    %v339 = vld [vmem:[%s2 + $0x4] sm:$0xf]
    %v340 = vld [vmem:[%s2 + $0x8] sm:$0xf]
    %v341 = vld [vmem:[%s2 + $0xc] sm:$0xf]
    %v342 = vld [vmem:[%s2 + $0x10] sm:$0xf]
    %v343 = vld [vmem:[%s2 + $0x14] sm:$0xf]
    %v344 = vld [vmem:[%s2 + $0x18] sm:$0xf]
    %v345 = vld [vmem:[%s2 + $0x1c] sm:$0xf]
    %v346 = vld [vmem:[%s2 + $0x20] sm:$0xf]
    %v347 = vld [vmem:[%s2 + $0x24] sm:$0xf]
    %v348 = vld [vmem:[%s2 + $0x28] sm:$0xf]
    %v349 = vld [vmem:[%s2 + $0x2c] sm:$0xf]
    %v350 = vld [vmem:[%s2 + $0x30] sm:$0xf]
    %v351 = vld [vmem:[%s2 + $0x34] sm:$0xf]
    %v352 = vld [vmem:[%s2 + $0x38] sm:$0xf]
    %v353 = vld [vmem:[%s2 + $0x3c] sm:$0xf]
    %v370 = vunpack.c.l.b16 %v338
    %v371 = vunpack.c.l.b16 %v339
    %v372 = vunpack.c.l.b16 %v340
    %v373 = vunpack.c.l.b16 %v341
    %v374 = vunpack.c.l.b16 %v342
    %v375 = vunpack.c.l.b16 %v343
    %v376 = vunpack.c.l.b16 %v344
    %v377 = vunpack.c.l.b16 %v345
    %v378 = vunpack.c.l.b16 %v346
    %v379 = vunpack.c.l.b16 %v347
    %v380 = vunpack.c.l.b16 %v348
    %v381 = vunpack.c.l.b16 %v349
    %v382 = vunpack.c.l.b16 %v350
    %v383 = vunpack.c.l.b16 %v351
    %v384 = vunpack.c.l.b16 %v352
    %v385 = vunpack.c.l.b16 %v353
    %v386 = vpack.c.b16 %v371, %v370
    %v387 = vpack.c.b16 %v373, %v372
    %v388 = vpack.c.b16 %v375, %v374
    %v389 = vpack.c.b16 %v377, %v376
    %v390 = vpack.c.b16 %v379, %v378
    %v391 = vpack.c.b16 %v381, %v380
    %v392 = vpack.c.b16 %v383, %v382
    %v393 = vpack.c.b16 %v385, %v384
    %402 = vmatprep.subr.bf16.mxu0 0
    %403 = vmatpush1.bf16.msra.mxu0 %v386
    %404 = vmatprep.subr.bf16.mxu0 0
    %405 = vmatpush1.bf16.msra.mxu0 %v387
    %406 = vmatprep.subr.bf16.mxu0 0
    %407 = vmatpush1.bf16.msra.mxu0 %v388
    %408 = vmatprep.subr.bf16.mxu0 0
    %409 = vmatpush1.bf16.msra.mxu0 %v389
    %410 = vmatprep.subr.bf16.mxu0 0
    %411 = vmatpush1.bf16.msra.mxu0 %v390
    %412 = vmatprep.subr.bf16.mxu0 0
    %413 = vmatpush1.bf16.msra.mxu0 %v391
    %414 = vmatprep.subr.bf16.mxu0 0
    %415 = vmatpush1.bf16.msra.mxu0 %v392
    %416 = vmatprep.subr.bf16.mxu0 0
    %417 = vmatpush1.bf16.msra.mxu0 %v393
    %418 = vmatprep.subr.bf16.mxu0 0
    %419 = vmatpush1.bf16.msra.mxu0 0
    %420 = vmatprep.subr.bf16.mxu0 0
    %421 = vmatpush1.bf16.msra.mxu0 0
    %422 = vmatprep.subr.bf16.mxu0 0
    %423 = vmatpush1.bf16.msra.mxu0 0
    %424 = vmatprep.subr.bf16.mxu0 0
    %425 = vmatpush1.bf16.msra.mxu0 0
    %426 = vmatprep.subr.bf16.mxu0 0
    %427 = vmatpush1.bf16.msra.mxu0 0
    %428 = vmatprep.subr.bf16.mxu0 0
    %429 = vmatpush1.bf16.msra.mxu0 0
    %430 = vmatprep.subr.bf16.mxu0 0
    %431 = vmatpush1.bf16.msra.mxu0 0
    %432 = vmatprep.subr.bf16.mxu0 0
    %433 = vmatpush1.bf16.msra.mxu0 0
    %434 = vmatprep.mubr.bf16.mxu0 0
    %435 = vmatmul.mubr.bf16.gmra.mrb[0].mxu0 %v48
    %v436 = vpop.f32.mrb[0].mxu0
    %v437 = vadd.f32 0.0, %v436
    %v438 = vpop.f32.mrb[0].mxu0
    %v439 = vpop.f32.mrb[0].mxu0
    %v440 = vadd.f32 0.0, %v439
    %v441 = vpop.f32.mrb[0].mxu0
    %442 = vmatprep.mubr.bf16.mxu0 0
    %443 = vmatmul.mubr.bf16.gmra.mrb[0].mxu0 %v49
    %v444 = vpop.f32.mrb[0].mxu0
    %v445 = vadd.f32 0.0, %v444
    %v446 = vpop.f32.mrb[0].mxu0
    %v447 = vpop.f32.mrb[0].mxu0
    %v448 = vadd.f32 0.0, %v447
    %v449 = vpop.f32.mrb[0].mxu0
    %450 = vmatprep.mubr.bf16.mxu0 0
    %451 = vmatmul.mubr.bf16.gmra.mrb[0].mxu0 %v50
    %v452 = vpop.f32.mrb[0].mxu0
    %v453 = vadd.f32 0.0, %v452
    %v454 = vpop.f32.mrb[0].mxu0
    %v455 = vpop.f32.mrb[0].mxu0
    %v456 = vadd.f32 0.0, %v455
    %v457 = vpop.f32.mrb[0].mxu0
    %458 = vmatprep.mubr.bf16.mxu0 0
    %459 = vmatmul.mubr.bf16.gmra.mrb[0].mxu0 %v51
    %v460 = vpop.f32.mrb[0].mxu0
    %v461 = vadd.f32 0.0, %v460
    %v462 = vpop.f32.mrb[0].mxu0
    %v463 = vpop.f32.mrb[0].mxu0
    %v464 = vadd.f32 0.0, %v463
    %v465 = vpop.f32.mrb[0].mxu0
    %466 = vmatprep.mubr.bf16.mxu0 0
    %467 = vmatmul.mubr.bf16.gmra.mrb[0].mxu0 %v52
    %v468 = vpop.f32.mrb[0].mxu0
    %v469 = vadd.f32 0.0, %v468
    %v470 = vpop.f32.mrb[0].mxu0
    %v471 = vpop.f32.mrb[0].mxu0
    %v472 = vadd.f32 0.0, %v471
    %v473 = vpop.f32.mrb[0].mxu0
    %474 = vmatprep.mubr.bf16.mxu0 0
    %475 = vmatmul.mubr.bf16.gmra.mrb[0].mxu0 %v53
    %v476 = vpop.f32.mrb[0].mxu0
    %v477 = vadd.f32 0.0, %v476
    %v478 = vpop.f32.mrb[0].mxu0
    %v479 = vpop.f32.mrb[0].mxu0
    %v480 = vadd.f32 0.0, %v479
    %v481 = vpop.f32.mrb[0].mxu0
    %482 = vmatprep.mubr.bf16.mxu0 0
    %483 = vmatmul.mubr.bf16.gmra.mrb[0].mxu0 %v54
    %v484 = vpop.f32.mrb[0].mxu0
    %v485 = vadd.f32 0.0, %v484
    %v486 = vpop.f32.mrb[0].mxu0
    %v487 = vpop.f32.mrb[0].mxu0
    %v488 = vadd.f32 0.0, %v487
    %v489 = vpop.f32.mrb[0].mxu0
    %490 = vmatprep.mubr.bf16.mxu0 0
    %491 = vmatmul.mubr.bf16.gmra.mrb[0].mxu0 %v55
    %v492 = vpop.f32.mrb[0].mxu0
    %v493 = vadd.f32 0.0, %v492
    %v494 = vpop.f32.mrb[0].mxu0
    %v495 = vpop.f32.mrb[0].mxu0
    %v496 = vadd.f32 0.0, %v495
    %v497 = vpop.f32.mrb[0].mxu0
    %498 = vdwg.mxu0
    %v499 = vadd.f32 %v276, %v437
    %v500 = vadd.f32 %v279, %v440
    %v501 = vadd.f32 %v284, %v445
    %v502 = vadd.f32 %v287, %v448
    %v503 = vadd.f32 %v292, %v453
    %v504 = vadd.f32 %v295, %v456
    %v505 = vadd.f32 %v300, %v461
    %v506 = vadd.f32 %v303, %v464
    %v507 = vadd.f32 %v308, %v469
    %v508 = vadd.f32 %v311, %v472
    %v509 = vadd.f32 %v316, %v477
    %v510 = vadd.f32 %v319, %v480
    %v511 = vadd.f32 %v324, %v485
    %v512 = vadd.f32 %v327, %v488
    %v513 = vadd.f32 %v332, %v493
    %v514 = vadd.f32 %v335, %v496
    %vm515 = vcmask 31744
    %516 = vst.msk [vmem:[#allocation2] sm:$0xff] %vm515, %v499
    %517 = vst.msk [vmem:[#allocation2 + $0x8] sm:$0xff] %vm515, %v500
    %518 = vst.msk [vmem:[#allocation2 + $0x10] sm:$0xff] %vm515, %v501
    %519 = vst.msk [vmem:[#allocation2 + $0x18] sm:$0xff] %vm515, %v502
    %520 = vst.msk [vmem:[#allocation2 + $0x20] sm:$0xff] %vm515, %v503
    %521 = vst.msk [vmem:[#allocation2 + $0x28] sm:$0xff] %vm515, %v504
    %522 = vst.msk [vmem:[#allocation2 + $0x30] sm:$0xff] %vm515, %v505
    %523 = vst.msk [vmem:[#allocation2 + $0x38] sm:$0xff] %vm515, %v506
    %524 = vst.msk [vmem:[#allocation2 + $0x40] sm:$0xff] %vm515, %v507
    %525 = vst.msk [vmem:[#allocation2 + $0x48] sm:$0xff] %vm515, %v508
    %526 = vst.msk [vmem:[#allocation2 + $0x50] sm:$0xff] %vm515, %v509
    %527 = vst.msk [vmem:[#allocation2 + $0x58] sm:$0xff] %vm515, %v510
    %528 = vst.msk [vmem:[#allocation2 + $0x60] sm:$0xff] %vm515, %v511
    %529 = vst.msk [vmem:[#allocation2 + $0x68] sm:$0xff] %vm515, %v512
    %530 = vst.msk [vmem:[#allocation2 + $0x70] sm:$0xff] %vm515, %v513
    %531 = vst.msk [vmem:[#allocation2 + $0x78] sm:$0xff] %vm515, %v514
    // Predicated region
    $region14: #{tpu_custom_call.1} parent=1 // pred_check
      _
    $region15: #{tpu_custom_call.1} parent=1 // pred_check_branch
      %533 = sbr.rel (0) target = $region17
    $region16: #{tpu_custom_call.1} parent=1 // pred_region
      %s535 = ssub.s32 2048, 64
      %536 = vsyncadd [#allocation3], %s535
      %s537 = sshll.u32 [#allocation2], 4
      %s538 = int_to_ptr.vmem [resolvable:$true] %s537
      %543 = dma.vmem_to_hbm [thread:$0]  %s538, 64, %s3, [#allocation3], 64, 64, 4
    $region17: #{tpu_custom_call.1} parent=1 // pred_fallthru
      _
    // Predicated region
    $region18: #{tpu_custom_call.1} parent=1 // pred_check
      _
    $region19: #{tpu_custom_call.1} parent=1 // pred_check_branch
      %545 = sbr.rel (0) target = $region21
    $region20: #{tpu_custom_call.1} parent=1 // pred_region
      %546 = dma.done [#allocation3], 2048
    $region21: #{tpu_custom_call.1} parent=1 // pred_fallthru
      _
    %547 = vsyncpa [#allocation3], 1

</llo_original>
